<compile_context>
chip_gen: v6e
topology: v6e:2x2x1
jax: 0.10.0
libtpu: 0.0.40
codegen_flags: <defaults>
</compile_context>

<pallas_src>
import functools
import math

import jax
import jax.numpy as jnp
import numpy as np
from jax import lax
from jax.experimental import pallas as pl
from jax.experimental.pallas import tpu as pltpu


# ----------------------------- in-kernel math helpers -----------------------------

_GELU_P = 0.3275911
# Abramowitz & Stegun 7.1.26 erf coefficients, pre-multiplied by 0.5 for the GELU identity.
_GELU_H1 = 0.5 * 0.254829592
_GELU_H2 = 0.5 * -0.284496736
_GELU_H3 = 0.5 * 1.421413741
_GELU_H4 = 0.5 * -1.453152027
_GELU_H5 = 0.5 * 1.061405429
_INV_SQRT2 = 1.0 / math.sqrt(2.0)


def _gelu_exact(x):
    """Exact (erf-based) GELU, branch-free:
         0.5*x*(1 + erf(x/sqrt(2))) == relu(x) - |x| * 0.5*P(t) * exp(-x^2/2),
       with t = 1/(1 + p*|x|/sqrt(2)) and P the A&S 7.1.26 polynomial (~1.5e-7 abs err).
       Only exp goes to the EUP.  On VALU-bound shapes the divide below can become
       pl.reciprocal(..., approx=True); kept exact here to hold the 2e-4 tolerance.
    """
    a = jnp.abs(x)
    u = a * _INV_SQRT2
    t = 1.0 / (1.0 + _GELU_P * u)
    poly = ((((_GELU_H5 * t + _GELU_H4) * t + _GELU_H3) * t + _GELU_H2) * t + _GELU_H1) * t
    return jnp.maximum(x, 0.0) - a * poly * jnp.exp(-u * u)


# ----------------------------------- kernel ---------------------------------------

def pairwise_head_kernel(q_ref, k_ref, qw_ref, kw_ref, w1p_ref, w2_ref, b2_ref,
                         o_ref, *, ti, tj, mm_dtype):
    # q_ref:   [1, Tj, Cq]      k_ref:   [1, Ti, Cq]
    # qw_ref:  [1, Tj, H]       kw_ref:  [1, Ti, H]     (qw already includes b1)
    # w1p_ref: [Cq, H]          (linear1 rows acting on `prod`)
    # w2_ref:  [H, K]           (LayerNorm gamma folded in)
    # b2_ref:  [1, K]           (LayerNorm beta folded in)
    # o_ref:   [1, Ti, Tj, K]
    cq = q_ref.shape[-1]
    hd = qw_ref.shape[-1]
    kb = w2_ref.shape[-1]

    q_j = q_ref[0]            # [Tj, Cq]
    k_i = k_ref[0]            # [Ti, Cq]
    qw_j = qw_ref[0]          # [Tj, H]
    kw_i = kw_ref[0]          # [Ti, H]

    # prod[(i_l, j_l), c] = q[b, j, c] * k[b, i, c]  (i-major pair order; Tj % 8 == 0
    # keeps the leading-dim collapse a layout no-op).
    prod = (k_i[:, None, :] * q_j[None, :, :]).reshape(ti * tj, cq)

    # linear1 = prod @ W1p + ((q @ W1d + b1)[j] - (k @ W1d)[i])   (diff half hoisted)
    h = jnp.dot(prod.astype(mm_dtype), w1p_ref[...],
                preferred_element_type=jnp.float32)                        # [Ti*Tj, H]
    h = h + (qw_j[None, :, :] - kw_i[:, None, :]).reshape(ti * tj, hd)

    # exact (erf) GELU, f32
    h = _gelu_exact(h)

    # LayerNorm over hidden dim (eps = 1e-5); single-pass moments, affine folded into W2/b2.
    m1 = jnp.mean(h, axis=-1, keepdims=True)
    m2 = jnp.mean(h * h, axis=-1, keepdims=True)
    hn = (h - m1) * lax.rsqrt(m2 - m1 * m1 + 1e-5)

    # linear2 (gamma/beta folded)
    out = jnp.dot(hn.astype(mm_dtype), w2_ref[...],
                  preferred_element_type=jnp.float32) + b2_ref[...]        # [Ti*Tj, K]

    o_ref[0] = out.reshape(ti, tj, kb)


# ----------------------------------- wrapper ---------------------------------------

def _pick_tile(n, target, quantum=8):
    """Largest divisor of n that is <= target and a multiple of `quantum`;
    falls back to the full extent (always a legal block dim)."""
    t = min(n, target)
    t -= t % quantum
    while t >= quantum:
        if n % t == 0:
            return t
        t -= quantum
    return n


def pairwise_prediction_head(x, params, *, tile_i=128, tile_j=None,
                             matmul_dtype=jnp.float32,
                             vmem_limit_bytes=48 * 1024 * 1024):
    """x: [B, L, D] float32. Returns [B, L, L, K] float32.

    tile_j=None uses the full L (each output row block is one contiguous L*K*4-byte
    DMA run); pass a smaller tile_j for very large L so the double-buffered output
    block stays inside the VMEM budget.  matmul_dtype=jnp.bfloat16 on v6e/v7x for MXU
    throughput (re-validate tolerance); keep float32 on v5e.

    # TODO(synk): optional `pairwise` tensor path (pairwise_state_dim > 0) not implemented;
    #             the module default (pairwise=None, pairwise_state_dim=0) is reproduced.
    # TODO(synk): lane-dense [B, L, L*K] packed output and the H<128 lane-occupancy
    #             restructure both need a minor-dim-merging relayout that Mosaic does not
    #             reliably lower; kept [B, L, L, K] with full-L j-tiles (contiguous row
    #             DMAs) as the safe fallback.
    """
    wdp, bdp, w1, b1, ln_g, ln_b, w2, b2 = params
    B, L, D = x.shape
    dp = wdp.shape[1]
    cq = dp // 2
    H = w1.shape[1]
    K = w2.shape[1]

    ti = _pick_tile(L, tile_i)
    tj = _pick_tile(L, L if tile_j is None else tile_j)

    # ---- one-time per-call precompute in plain JAX (O(B*L), off the L^2 path) ----
    xp = x @ wdp + bdp                        # [B, L, dp]
    q, k = xp[..., :cq], xp[..., cq:]         # [B, L, Cq] each
    w1p, w1d = w1[:cq], w1[cq:]               # linear1 rows for the (prod, diff) concat
    qw = q @ w1d + b1                         # [B, L, H]   (b1 folded here)
    kw = k @ w1d                              # [B, L, H]
    # fold LayerNorm affine into linear2
    w2f = ln_g[:, None] * w2                  # [H, K]
    b2f = (ln_b @ w2 + b2).reshape(1, K)      # [1, K]

    w1p_mm = w1p.astype(matmul_dtype)
    w2f_mm = w2f.astype(matmul_dtype)

    kernel = functools.partial(pairwise_head_kernel, ti=ti, tj=tj, mm_dtype=matmul_dtype)
    const = lambda shp: pl.BlockSpec(shp, lambda b, i, j: (0, 0))

    return pl.pallas_call(
        kernel,
        out_shape=jax.ShapeDtypeStruct((B, L, L, K), jnp.float32),
        grid_spec=pltpu.PrefetchScalarGridSpec(
            num_scalar_prefetch=0,
            grid=(B, L // ti, L // tj),
            in_specs=[
                pl.BlockSpec((1, tj, cq), lambda b, i, j: (b, j, 0)),   # q_j
                pl.BlockSpec((1, ti, cq), lambda b, i, j: (b, i, 0)),   # k_i
                pl.BlockSpec((1, tj, H), lambda b, i, j: (b, j, 0)),    # qw_j = q@W1d + b1
                pl.BlockSpec((1, ti, H), lambda b, i, j: (b, i, 0)),    # kw_i = k@W1d
                const((cq, H)),                                         # W1p
                const((H, K)),                                          # W2' (gamma folded)
                const((1, K)),                                          # b2' (beta folded)
            ],
            out_specs=pl.BlockSpec((1, ti, tj, K), lambda b, i, j: (b, i, j, 0)),
        ),
        compiler_params=pltpu.CompilerParams(
            dimension_semantics=("parallel", "parallel", "arbitrary"),
            vmem_limit_bytes=vmem_limit_bytes,
        ),
    )(q, k, qw, kw, w1p_mm, w2f_mm, b2f)


# ------------------------------- pure-JAX reference --------------------------------

def reference(x, params):
    wdp, bdp, w1, b1, ln_g, ln_b, w2, b2 = params
    xp = x @ wdp + bdp
    q, k = jnp.split(xp, 2, axis=-1)
    prod = q[:, None, :, :] * k[:, :, None, :]
    diff = q[:, None, :, :] - k[:, :, None, :]
    f = jnp.concatenate([prod, diff], axis=-1)
    h = f @ w1 + b1
    h = jax.nn.gelu(h, approximate=False)
    mu = h.mean(-1, keepdims=True)
    var = ((h - mu) ** 2).mean(-1, keepdims=True)
    h = (h - mu) / jnp.sqrt(var + 1e-5) * ln_g + ln_b
    return h @ w2 + b2


# ------------------------------------- main ----------------------------------------

if __name__ == "__main__":
    # module hyperparameters (small, consistent with the forward)
    B, L = 2, 16
    input_dim, downproject_dim, hidden_dim, n_bins = 32, 16, 32, 16

    key = jax.random.PRNGKey(0)
    ks = jax.random.split(key, 9)

    # deterministic synthetic parameters (weights stored already transposed: [in, out])
    wdp = (jax.random.normal(ks[0], (input_dim, downproject_dim), jnp.float32)
           / math.sqrt(input_dim))
    bdp = 0.1 * jax.random.normal(ks[1], (downproject_dim,), jnp.float32)
    w1 = (jax.random.normal(ks[2], (downproject_dim, hidden_dim), jnp.float32)
          / math.sqrt(downproject_dim))
    b1 = 0.1 * jax.random.normal(ks[3], (hidden_dim,), jnp.float32)
    ln_g = 1.0 + 0.1 * jax.random.normal(ks[4], (hidden_dim,), jnp.float32)
    ln_b = 0.1 * jax.random.normal(ks[5], (hidden_dim,), jnp.float32)
    w2 = (jax.random.normal(ks[6], (hidden_dim, n_bins), jnp.float32)
          / math.sqrt(hidden_dim))
    b2 = 0.1 * jax.random.normal(ks[7], (n_bins,), jnp.float32)
    params = (wdp, bdp, w1, b1, ln_g, ln_b, w2, b2)

    x = jax.random.normal(ks[8], (B, L, input_dim), jnp.float32)

    # tile_i = tile_j = 8 at L = 16 so the demo exercises a real 2x2 pairwise tile grid
    # (nonzero block indices on the i- and j-indexed inputs and on the output blocks).
    out = pairwise_prediction_head(x, params, tile_i=8, tile_j=8)
    out = jax.block_until_ready(out)

    ref = reference(x, params)
    np.testing.assert_allclose(np.asarray(out), np.asarray(ref), atol=2e-4, rtol=2e-4)

    print("KERNEL_OK")
</pallas_src>

<mosaic_0001>
module attributes {stable_mosaic.version = 11 : i64} {
  func.func @pairwise_head_kernel(%arg0: i32, %arg1: i32, %arg2: i32, %arg3: memref<1x8x8xf32, #tpu.memory_space<vmem>>, %arg4: memref<1x8x8xf32, #tpu.memory_space<vmem>>, %arg5: memref<1x8x32xf32, #tpu.memory_space<vmem>>, %arg6: memref<1x8x32xf32, #tpu.memory_space<vmem>>, %arg7: memref<8x32xf32, #tpu.memory_space<vmem>>, %arg8: memref<32x16xf32, #tpu.memory_space<vmem>>, %arg9: memref<1x16xf32, #tpu.memory_space<vmem>>, %arg10: memref<1x8x8x16xf32, #tpu.memory_space<vmem>>) attributes {dimension_semantics = [#tpu.dimension_semantics<parallel>, #tpu.dimension_semantics<parallel>, #tpu.dimension_semantics<arbitrary>], iteration_bounds = array<i64: 2, 2, 2>, scalar_prefetch = 0 : i64, scratch_operands = 0 : i64, tpu.core_type = #tpu.core_type<tc>, window_params = [{transform_indices = @transform_0, window_bounds = array<i64: 1, 8, 8>}, {transform_indices = @transform_1, window_bounds = array<i64: 1, 8, 8>}, {transform_indices = @transform_2, window_bounds = array<i64: 1, 8, 32>}, {transform_indices = @transform_3, window_bounds = array<i64: 1, 8, 32>}, {pipeline_mode = #tpu.pipeline_mode<synchronous>, transform_indices = @transform_4, window_bounds = array<i64: 8, 32>}, {pipeline_mode = #tpu.pipeline_mode<synchronous>, transform_indices = @transform_5, window_bounds = array<i64: 32, 16>}, {pipeline_mode = #tpu.pipeline_mode<synchronous>, transform_indices = @transform_6, window_bounds = array<i64: 1, 16>}, {transform_indices = @transform_7, window_bounds = array<i64: 1, 8, 8, 16>}]} {
    %c0 = arith.constant 0 : index
    %c0_0 = arith.constant 0 : index
    %c0_1 = arith.constant 0 : index
    %0 = vector.load %arg3[%c0, %c0_0, %c0_1] : memref<1x8x8xf32, #tpu.memory_space<vmem>>, vector<1x8x8xf32>
    %1 = vector.shape_cast %0 : vector<1x8x8xf32> to vector<8x8xf32>
    %c0_2 = arith.constant 0 : index
    %c0_3 = arith.constant 0 : index
    %c0_4 = arith.constant 0 : index
    %2 = vector.load %arg4[%c0_2, %c0_3, %c0_4] : memref<1x8x8xf32, #tpu.memory_space<vmem>>, vector<1x8x8xf32>
    %3 = vector.shape_cast %2 : vector<1x8x8xf32> to vector<8x8xf32>
    %c0_5 = arith.constant 0 : index
    %c0_6 = arith.constant 0 : index
    %c0_7 = arith.constant 0 : index
    %4 = vector.load %arg5[%c0_5, %c0_6, %c0_7] : memref<1x8x32xf32, #tpu.memory_space<vmem>>, vector<1x8x32xf32>
    %5 = vector.shape_cast %4 : vector<1x8x32xf32> to vector<8x32xf32>
    %c0_8 = arith.constant 0 : index
    %c0_9 = arith.constant 0 : index
    %c0_10 = arith.constant 0 : index
    %6 = vector.load %arg6[%c0_8, %c0_9, %c0_10] : memref<1x8x32xf32, #tpu.memory_space<vmem>>, vector<1x8x32xf32>
    %7 = vector.shape_cast %6 : vector<1x8x32xf32> to vector<8x32xf32>
    %8 = vector.shape_cast %3 : vector<8x8xf32> to vector<8x1x8xf32>
    %9 = vector.shape_cast %1 : vector<8x8xf32> to vector<1x8x8xf32>
    %10 = vector.broadcast %8 : vector<8x1x8xf32> to vector<8x8x8xf32>
    %11 = vector.broadcast %9 : vector<1x8x8xf32> to vector<8x8x8xf32>
    %12 = arith.mulf %10, %11 : vector<8x8x8xf32>
    %13 = vector.shape_cast %12 : vector<8x8x8xf32> to vector<64x8xf32>
    %c0_11 = arith.constant 0 : index
    %c0_12 = arith.constant 0 : index
    %14 = vector.load %arg7[%c0_11, %c0_12] : memref<8x32xf32, #tpu.memory_space<vmem>>, vector<8x32xf32>
    %cst = arith.constant dense<0.000000e+00> : vector<64x32xf32>
    %15 = tpu.matmul %13, %14, %cst {dimension_numbers = #tpu.dot_dimension_numbers<[1], [0], [0], [1], [0, 0, 1, 1], [], []>} : vector<64x8xf32>, vector<8x32xf32>, vector<64x32xf32> -> vector<64x32xf32>
    %16 = vector.shape_cast %5 : vector<8x32xf32> to vector<1x8x32xf32>
    %17 = vector.shape_cast %7 : vector<8x32xf32> to vector<8x1x32xf32>
    %18 = vector.broadcast %16 : vector<1x8x32xf32> to vector<8x8x32xf32>
    %19 = vector.broadcast %17 : vector<8x1x32xf32> to vector<8x8x32xf32>
    %20 = arith.subf %18, %19 : vector<8x8x32xf32>
    %21 = vector.shape_cast %20 : vector<8x8x32xf32> to vector<64x32xf32>
    %22 = arith.addf %15, %21 : vector<64x32xf32>
    %23 = math.absf %22 : vector<64x32xf32>
    %cst_13 = arith.constant 0.707106769 : f32
    %24 = vector.broadcast %cst_13 : f32 to vector<64x32xf32>
    %25 = arith.mulf %23, %24 : vector<64x32xf32>
    %cst_14 = arith.constant 0.327591091 : f32
    %26 = vector.broadcast %cst_14 : f32 to vector<64x32xf32>
    %27 = arith.mulf %26, %25 : vector<64x32xf32>
    %cst_15 = arith.constant 1.000000e+00 : f32
    %28 = vector.broadcast %cst_15 : f32 to vector<64x32xf32>
    %29 = arith.addf %28, %27 : vector<64x32xf32>
    %cst_16 = arith.constant 1.000000e+00 : f32
    %30 = vector.broadcast %cst_16 : f32 to vector<64x32xf32>
    %31 = arith.divf %30, %29 : vector<64x32xf32>
    %cst_17 = arith.constant 0.53070271 : f32
    %32 = vector.broadcast %cst_17 : f32 to vector<64x32xf32>
    %33 = arith.mulf %32, %31 : vector<64x32xf32>
    %cst_18 = arith.constant -0.72657603 : f32
    %34 = vector.broadcast %cst_18 : f32 to vector<64x32xf32>
    %35 = arith.addf %33, %34 : vector<64x32xf32>
    %36 = arith.mulf %35, %31 : vector<64x32xf32>
    %cst_19 = arith.constant 0.710706889 : f32
    %37 = vector.broadcast %cst_19 : f32 to vector<64x32xf32>
    %38 = arith.addf %36, %37 : vector<64x32xf32>
    %39 = arith.mulf %38, %31 : vector<64x32xf32>
    %cst_20 = arith.constant -0.142248362 : f32
    %40 = vector.broadcast %cst_20 : f32 to vector<64x32xf32>
    %41 = arith.addf %39, %40 : vector<64x32xf32>
    %42 = arith.mulf %41, %31 : vector<64x32xf32>
    %cst_21 = arith.constant 0.127414793 : f32
    %43 = vector.broadcast %cst_21 : f32 to vector<64x32xf32>
    %44 = arith.addf %42, %43 : vector<64x32xf32>
    %45 = arith.mulf %44, %31 : vector<64x32xf32>
    %cst_22 = arith.constant 0.000000e+00 : f32
    %46 = vector.broadcast %cst_22 : f32 to vector<64x32xf32>
    %47 = arith.maximumf %22, %46 : vector<64x32xf32>
    %48 = arith.mulf %23, %45 : vector<64x32xf32>
    %cst_23 = arith.constant 0.000000e+00 : f32
    %49 = vector.broadcast %cst_23 : f32 to vector<64x32xf32>
    %50 = arith.subf %49, %25 : vector<64x32xf32>
    %51 = arith.mulf %50, %25 : vector<64x32xf32>
    %52 = math.exp %51 : vector<64x32xf32>
    %53 = arith.mulf %48, %52 : vector<64x32xf32>
    %54 = arith.subf %47, %53 : vector<64x32xf32>
    %cst_24 = arith.constant dense<0.000000e+00> : vector<64xf32>
    %55 = vector.multi_reduction <add>, %54, %cst_24 [1] : vector<64x32xf32> to vector<64xf32>
    %56 = vector.shape_cast %55 : vector<64xf32> to vector<64x1xf32>
    %cst_25 = arith.constant 3.200000e+01 : f32
    %57 = vector.broadcast %cst_25 : f32 to vector<64x1xf32>
    %58 = arith.divf %56, %57 : vector<64x1xf32>
    %59 = arith.mulf %54, %54 : vector<64x32xf32>
    %cst_26 = arith.constant dense<0.000000e+00> : vector<64xf32>
    %60 = vector.multi_reduction <add>, %59, %cst_26 [1] : vector<64x32xf32> to vector<64xf32>
    %61 = vector.shape_cast %60 : vector<64xf32> to vector<64x1xf32>
    %cst_27 = arith.constant 3.200000e+01 : f32
    %62 = vector.broadcast %cst_27 : f32 to vector<64x1xf32>
    %63 = arith.divf %61, %62 : vector<64x1xf32>
    %64 = vector.broadcast %58 : vector<64x1xf32> to vector<64x32xf32>
    %65 = arith.subf %54, %64 : vector<64x32xf32>
    %66 = arith.mulf %58, %58 : vector<64x1xf32>
    %67 = arith.subf %63, %66 : vector<64x1xf32>
    %cst_28 = arith.constant 9.99999974E-6 : f32
    %68 = vector.broadcast %cst_28 : f32 to vector<64x1xf32>
    %69 = arith.addf %67, %68 : vector<64x1xf32>
    %70 = math.rsqrt %69 : vector<64x1xf32>
    %71 = vector.broadcast %70 : vector<64x1xf32> to vector<64x32xf32>
    %72 = arith.mulf %65, %71 : vector<64x32xf32>
    %c0_29 = arith.constant 0 : index
    %c0_30 = arith.constant 0 : index
    %73 = vector.load %arg8[%c0_29, %c0_30] : memref<32x16xf32, #tpu.memory_space<vmem>>, vector<32x16xf32>
    %cst_31 = arith.constant dense<0.000000e+00> : vector<64x16xf32>
    %74 = tpu.matmul %72, %73, %cst_31 {dimension_numbers = #tpu.dot_dimension_numbers<[1], [0], [0], [1], [0, 0, 1, 1], [], []>} : vector<64x32xf32>, vector<32x16xf32>, vector<64x16xf32> -> vector<64x16xf32>
    %c0_32 = arith.constant 0 : index
    %c0_33 = arith.constant 0 : index
    %75 = vector.load %arg9[%c0_32, %c0_33] : memref<1x16xf32, #tpu.memory_space<vmem>>, vector<1x16xf32>
    %76 = vector.broadcast %75 : vector<1x16xf32> to vector<64x16xf32>
    %77 = arith.addf %74, %76 : vector<64x16xf32>
    %78 = vector.shape_cast %77 : vector<64x16xf32> to vector<8x8x16xf32>
    %c0_34 = arith.constant 0 : index
    %c0_35 = arith.constant 0 : index
    %c0_36 = arith.constant 0 : index
    %c0_37 = arith.constant 0 : index
    %79 = vector.load %arg10[%c0_34, %c0_35, %c0_36, %c0_37] : memref<1x8x8x16xf32, #tpu.memory_space<vmem>>, vector<1x8x8x16xf32>
    %80 = vector.shape_cast %79 : vector<1x8x8x16xf32> to vector<8x8x16xf32>
    %81 = vector.shape_cast %78 : vector<8x8x16xf32> to vector<1x8x8x16xf32>
    tpu.vector_store %arg10[%c0_34, %c0_35, %c0_36, %c0_37], %81 {strides = array<i32>} : memref<1x8x8x16xf32, #tpu.memory_space<vmem>>, vector<1x8x8x16xf32>,
    return
  }
  func.func @transform_0(%arg0: i32, %arg1: i32, %arg2: i32) -> (i32, i32, i32) {
    %c0_i32 = arith.constant 0 : i32
    %c0_i32_0 = arith.constant 0 : i32
    return %arg0, %arg2, %c0_i32 : i32, i32, i32
  }
  func.func @transform_1(%arg0: i32, %arg1: i32, %arg2: i32) -> (i32, i32, i32) {
    %c0_i32 = arith.constant 0 : i32
    %c0_i32_0 = arith.constant 0 : i32
    return %arg0, %arg1, %c0_i32 : i32, i32, i32
  }
  func.func @transform_2(%arg0: i32, %arg1: i32, %arg2: i32) -> (i32, i32, i32) {
    %c0_i32 = arith.constant 0 : i32
    %c0_i32_0 = arith.constant 0 : i32
    return %arg0, %arg2, %c0_i32 : i32, i32, i32
  }
  func.func @transform_3(%arg0: i32, %arg1: i32, %arg2: i32) -> (i32, i32, i32) {
    %c0_i32 = arith.constant 0 : i32
    %c0_i32_0 = arith.constant 0 : i32
    return %arg0, %arg1, %c0_i32 : i32, i32, i32
  }
  func.func @transform_4(%arg0: i32, %arg1: i32, %arg2: i32) -> (i32, i32) {
    %c0_i32 = arith.constant 0 : i32
    %c0_i32_0 = arith.constant 0 : i32
    %c0_i32_1 = arith.constant 0 : i32
    return %c0_i32, %c0_i32_0 : i32, i32
  }
  func.func @transform_5(%arg0: i32, %arg1: i32, %arg2: i32) -> (i32, i32) {
    %c0_i32 = arith.constant 0 : i32
    %c0_i32_0 = arith.constant 0 : i32
    %c0_i32_1 = arith.constant 0 : i32
    return %c0_i32, %c0_i32_0 : i32, i32
  }
  func.func @transform_6(%arg0: i32, %arg1: i32, %arg2: i32) -> (i32, i32) {
    %c0_i32 = arith.constant 0 : i32
    %c0_i32_0 = arith.constant 0 : i32
    %c0_i32_1 = arith.constant 0 : i32
    return %c0_i32, %c0_i32_0 : i32, i32
  }
  func.func @transform_7(%arg0: i32, %arg1: i32, %arg2: i32) -> (i32, i32, i32, i32) {
    %c0_i32 = arith.constant 0 : i32
    %c0_i32_0 = arith.constant 0 : i32
    return %arg0, %arg1, %arg2, %c0_i32 : i32, i32, i32, i32
  }
}

</mosaic_0001>

<llo_original>
// kernel: tpu_custom_call.1
$region0: #{tpu_custom_call.1}
  #allocation0 [shape = 'u32[]', space=smem, size = 0x4, offset = 0x4, fixed_abs, tag = 'smem constant byte address 0x4 - core index']
  #allocation1 [shape = 'u32[144,128]{1,0:T(1,128)}', space=vmem, size = 0x12000, scoped, tag = 'internal scratch']
  %s0 = inlined_call_operand.vmem [shape: f32[2,16,8], index: 0, kind: input, shape index: {}]
  %s1 = inlined_call_operand.vmem [shape: f32[2,16,8], index: 1, kind: input, shape index: {}]
  %s2 = inlined_call_operand.vmem [shape: f32[2,16,32], index: 2, kind: input, shape index: {}]
  %s3 = inlined_call_operand.vmem [shape: f32[2,16,32], index: 3, kind: input, shape index: {}]
  %s4 = inlined_call_operand.vmem [shape: f32[8,32], index: 4, kind: input, shape index: {}]
  %s5 = inlined_call_operand.vmem [shape: f32[32,16], index: 5, kind: input, shape index: {}]
  %s6 = inlined_call_operand.vmem [shape: f32[1,16], index: 6, kind: input, shape index: {}]
  %s7 = inlined_call_operand.hbm [shape: f32[2,16,16,16], index: 7, kind: output, shape index: {}]
  %s8 = sld [smem:[#allocation0]]
  $region61: #{tpu_custom_call.1} parent=0
    _
  %s10 = ssub.s32 1, %s8
  %s11 = scalar_select 0, %s10, %s8
  $region1: #{tpu_custom_call.1} parent=0
    #allocation2 [shape = 'u8[65536]{0}', space=vmem, size = 0x10000, scoped, tag = 'output window, operand 0']
    #allocation3 [shape = 's32[2]{0}', space=sflag, size = 0x8, scoped, tag = 'scoped memory for tpu_custom_call.1']
    %12 = vsyncpa [#allocation3], 0
    %s13 = scalar_lea.sflag [#allocation3], 1
    %14 = vsyncpa %s13, 0
    loop: start=0, step=1, limit=10
    $region2: #{tpu_custom_call.1} parent=1 // loop_pre_header
      _
    $region3: #{tpu_custom_call.1} parent=1 // loop_header
      %s16 = sphi 0, %s20
      %p17 = scmp.ge.s32.totalorder %s16, 10
      %s23 = sphi 0, %s42
      %s24 = sphi 0, %s38
      %s25 = sphi 0, %s34
      %s26 = sphi 0, %s23
      %s27 = sphi 0, %s24
      %s28 = sphi 0, %s25
      %s29 = sphi 0, %s26
      %s30 = sphi 0, %s27
      %s31 = sphi 0, %s28
      %s47 = sphi 0, %s49
      %s50 = sphi 0, %s47
      %s51 = sphi 0, %s50
      %s67 = sphi 0, %s51
      %s75 = sphi 0, %s77
      %s78 = sphi 0, %s75
      %s79 = sphi 0, %s78
      %s95 = sphi 0, %s79
      %s103 = sphi 0, %s105
      %s106 = sphi 0, %s103
      %s107 = sphi 0, %s106
      %s123 = sphi 0, %s107
      %s131 = sphi 0, %s133
      %s134 = sphi 0, %s131
      %s135 = sphi 0, %s134
      %s151 = sphi 0, %s135
      %s155 = sphi 0, %s155
      %s157 = sphi 0, %s155
      %s158 = sphi 0, %s157
      %s172 = sphi 0, %s158
      %s176 = sphi 0, %s176
      %s178 = sphi 0, %s176
      %s179 = sphi 0, %s178
      %s193 = sphi 0, %s179
      %s197 = sphi 0, %s197
      %s199 = sphi 0, %s197
      %s200 = sphi 0, %s199
      %s214 = sphi 0, %s200
      %s224 = sphi 0, %s226
      %s227 = sphi 0, %s224
      %s228 = sphi 0, %s227
      %s244 = sphi 0, %s228
    $region4: #{tpu_custom_call.1} parent=1 // loop_header_branch
      %19 = sbr.rel (%p17) target = $region8
    $region5: #{tpu_custom_call.1} parent=1 // loop_body
      %s21 = ssub.s32 %s16, 1
      %s22 = ssub.s32 %s16, 2
      %s32 = sadd.s32 1, %s25
      %p33 = scmp.ge.s32.totalorder %s32, 2
      %s34 = scalar_select %p33, 0, %s32
      %s35 = sadd.s32 1, %s24
      %s36 = scalar_select %p33, %s35, %s24
      %p37 = scmp.ge.s32.totalorder %s36, 2
      %s38 = scalar_select %p37, 0, %s36
      %s39 = sadd.s32 1, %s23
      %s40 = scalar_select %p37, %s39, %s23
      %p41 = scmp.ge.s32.totalorder %s40, 2
      %s42 = scalar_select %p41, 0, %s40
      %s43 = ssub.s32 %s23, %s42
      %s44 = ssub.s32 %s25, %s34
      %s45 = sor.u32 %s43, %s44
      %p46 = scmp.eq.s32.totalorder %s45, 0
      %s48 = sadd.s32 %s47, 1
      %s49 = scalar_select %p46, %s47, %s48
      %p52 = pneg %p46
      %p53 = scmp.eq.s32.totalorder %s16, 7
      %p54 = por %p52, %p53
      %p55 = scmp.ne.s32.totalorder %s47, %s50
      %p56 = scmp.eq.s32.totalorder %s16, 0
      %p57 = por %p55, %p56
      %p58 = scmp.ne.s32.totalorder %s47, %s50
      %p59 = scmp.eq.s32.totalorder %s21, 7
      %p60 = por %p58, %p59
      %p61 = scmp.ne.s32.totalorder %s50, %s51
      %p62 = scmp.eq.s32.totalorder %s21, 0
      %p63 = por %p61, %p62
      %p64 = scmp.ne.s32.totalorder %s50, %s51
      %p65 = scmp.eq.s32.totalorder %s22, 7
      %p66 = por %p64, %p65
      %p68 = scmp.ne.s32.totalorder %s51, %s67
      %p69 = scmp.eq.s32.totalorder %s22, 0
      %p70 = por %p68, %p69
      %s71 = ssub.s32 %s23, %s42
      %s72 = ssub.s32 %s24, %s38
      %s73 = sor.u32 %s71, %s72
      %p74 = scmp.eq.s32.totalorder %s73, 0
      %s76 = sadd.s32 %s75, 1
      %s77 = scalar_select %p74, %s75, %s76
      %p80 = pneg %p74
      %p81 = scmp.eq.s32.totalorder %s16, 7
      %p82 = por %p80, %p81
      %p83 = scmp.ne.s32.totalorder %s75, %s78
      %p84 = scmp.eq.s32.totalorder %s16, 0
      %p85 = por %p83, %p84
      %p86 = scmp.ne.s32.totalorder %s75, %s78
      %p87 = scmp.eq.s32.totalorder %s21, 7
      %p88 = por %p86, %p87
      %p89 = scmp.ne.s32.totalorder %s78, %s79
      %p90 = scmp.eq.s32.totalorder %s21, 0
      %p91 = por %p89, %p90
      %p92 = scmp.ne.s32.totalorder %s78, %s79
      %p93 = scmp.eq.s32.totalorder %s22, 7
      %p94 = por %p92, %p93
      %p96 = scmp.ne.s32.totalorder %s79, %s95
      %p97 = scmp.eq.s32.totalorder %s22, 0
      %p98 = por %p96, %p97
      %s99 = ssub.s32 %s23, %s42
      %s100 = ssub.s32 %s25, %s34
      %s101 = sor.u32 %s99, %s100
      %p102 = scmp.eq.s32.totalorder %s101, 0
      %s104 = sadd.s32 %s103, 1
      %s105 = scalar_select %p102, %s103, %s104
      %p108 = pneg %p102
      %p109 = scmp.eq.s32.totalorder %s16, 7
      %p110 = por %p108, %p109
      %p111 = scmp.ne.s32.totalorder %s103, %s106
      %p112 = scmp.eq.s32.totalorder %s16, 0
      %p113 = por %p111, %p112
      %p114 = scmp.ne.s32.totalorder %s103, %s106
      %p115 = scmp.eq.s32.totalorder %s21, 7
      %p116 = por %p114, %p115
      %p117 = scmp.ne.s32.totalorder %s106, %s107
      %p118 = scmp.eq.s32.totalorder %s21, 0
      %p119 = por %p117, %p118
      %p120 = scmp.ne.s32.totalorder %s106, %s107
      %p121 = scmp.eq.s32.totalorder %s22, 7
      %p122 = por %p120, %p121
      %p124 = scmp.ne.s32.totalorder %s107, %s123
      %p125 = scmp.eq.s32.totalorder %s22, 0
      %p126 = por %p124, %p125
      %s127 = ssub.s32 %s23, %s42
      %s128 = ssub.s32 %s24, %s38
      %s129 = sor.u32 %s127, %s128
      %p130 = scmp.eq.s32.totalorder %s129, 0
      %s132 = sadd.s32 %s131, 1
      %s133 = scalar_select %p130, %s131, %s132
      %p136 = pneg %p130
      %p137 = scmp.eq.s32.totalorder %s16, 7
      %p138 = por %p136, %p137
      %p139 = scmp.ne.s32.totalorder %s131, %s134
      %p140 = scmp.eq.s32.totalorder %s16, 0
      %p141 = por %p139, %p140
      %p142 = scmp.ne.s32.totalorder %s131, %s134
      %p143 = scmp.eq.s32.totalorder %s21, 7
      %p144 = por %p142, %p143
      %p145 = scmp.ne.s32.totalorder %s134, %s135
      %p146 = scmp.eq.s32.totalorder %s21, 0
      %p147 = por %p145, %p146
      %p148 = scmp.ne.s32.totalorder %s134, %s135
      %p149 = scmp.eq.s32.totalorder %s22, 7
      %p150 = por %p148, %p149
      %p152 = scmp.ne.s32.totalorder %s135, %s151
      %p153 = scmp.eq.s32.totalorder %s22, 0
      %p154 = por %p152, %p153
      %s156 = sadd.s32 %s155, 1
      %p159 = scmp.eq.s32.totalorder %s16, 7
      %p160 = scmp.ne.s32.totalorder %s155, %s157
      %p161 = scmp.eq.s32.totalorder %s16, 0
      %p162 = por %p160, %p161
      %p163 = scmp.ne.s32.totalorder %s155, %s157
      %p164 = scmp.eq.s32.totalorder %s21, 7
      %p165 = por %p163, %p164
      %p166 = scmp.ne.s32.totalorder %s157, %s158
      %p167 = scmp.eq.s32.totalorder %s21, 0
      %p168 = por %p166, %p167
      %p169 = scmp.ne.s32.totalorder %s157, %s158
      %p170 = scmp.eq.s32.totalorder %s22, 7
      %p171 = por %p169, %p170
      %p173 = scmp.ne.s32.totalorder %s158, %s172
      %p174 = scmp.eq.s32.totalorder %s22, 0
      %p175 = por %p173, %p174
      %s177 = sadd.s32 %s176, 1
      %p180 = scmp.eq.s32.totalorder %s16, 7
      %p181 = scmp.ne.s32.totalorder %s176, %s178
      %p182 = scmp.eq.s32.totalorder %s16, 0
      %p183 = por %p181, %p182
      %p184 = scmp.ne.s32.totalorder %s176, %s178
      %p185 = scmp.eq.s32.totalorder %s21, 7
      %p186 = por %p184, %p185
      %p187 = scmp.ne.s32.totalorder %s178, %s179
      %p188 = scmp.eq.s32.totalorder %s21, 0
      %p189 = por %p187, %p188
      %p190 = scmp.ne.s32.totalorder %s178, %s179
      %p191 = scmp.eq.s32.totalorder %s22, 7
      %p192 = por %p190, %p191
      %p194 = scmp.ne.s32.totalorder %s179, %s193
      %p195 = scmp.eq.s32.totalorder %s22, 0
      %p196 = por %p194, %p195
      %s198 = sadd.s32 %s197, 1
      %p201 = scmp.eq.s32.totalorder %s16, 7
      %p202 = scmp.ne.s32.totalorder %s197, %s199
      %p203 = scmp.eq.s32.totalorder %s16, 0
      %p204 = por %p202, %p203
      %p205 = scmp.ne.s32.totalorder %s197, %s199
      %p206 = scmp.eq.s32.totalorder %s21, 7
      %p207 = por %p205, %p206
      %p208 = scmp.ne.s32.totalorder %s199, %s200
      %p209 = scmp.eq.s32.totalorder %s21, 0
      %p210 = por %p208, %p209
      %p211 = scmp.ne.s32.totalorder %s199, %s200
      %p212 = scmp.eq.s32.totalorder %s22, 7
      %p213 = por %p211, %p212
      %p215 = scmp.ne.s32.totalorder %s200, %s214
      %p216 = scmp.eq.s32.totalorder %s22, 0
      %p217 = por %p215, %p216
      %s218 = ssub.s32 %s23, %s42
      %s219 = ssub.s32 %s24, %s38
      %s220 = sor.u32 %s218, %s219
      %s221 = ssub.s32 %s25, %s34
      %s222 = sor.u32 %s220, %s221
      %p223 = scmp.eq.s32.totalorder %s222, 0
      %s225 = sadd.s32 %s224, 1
      %s226 = scalar_select %p223, %s224, %s225
      %p229 = pneg %p223
      %p230 = scmp.eq.s32.totalorder %s16, 7
      %p231 = por %p229, %p230
      %p232 = scmp.ne.s32.totalorder %s224, %s227
      %p233 = scmp.eq.s32.totalorder %s16, 0
      %p234 = por %p232, %p233
      %p235 = scmp.ne.s32.totalorder %s224, %s227
      %p236 = scmp.eq.s32.totalorder %s21, 7
      %p237 = por %p235, %p236
      %p238 = scmp.ne.s32.totalorder %s227, %s228
      %p239 = scmp.eq.s32.totalorder %s21, 0
      %p240 = por %p238, %p239
      %p241 = scmp.ne.s32.totalorder %s227, %s228
      %p242 = scmp.eq.s32.totalorder %s22, 7
      %p243 = por %p241, %p242
      %p245 = scmp.ne.s32.totalorder %s228, %s244
      %p246 = scmp.eq.s32.totalorder %s22, 0
      %p247 = por %p245, %p246
      %p248 = scmp.le.s32.totalorder 1, %s16
      %p249 = scmp.lt.s32.totalorder %s16, 9
      %p250 = pnand %p248, %p249
      %p251 = pneg %p250
      // Predicated region
      $region9: #{tpu_custom_call.1} parent=5 // pred_check
        _
      $region10: #{tpu_custom_call.1} parent=5 // pred_check_branch
        %253 = sbr.rel (%p250) target = $region12
      $region11: #{tpu_custom_call.1} parent=5 // pred_region
        %s254 = ssub.s32 %s16, 1
        // Predicated region
        $region13: #{tpu_custom_call.1} parent=11 // pred_check
          %p255 = pneg %p168
        $region14: #{tpu_custom_call.1} parent=11 // pred_check_branch
          %257 = sbr.rel (%p255) target = $region16
        $region15: #{tpu_custom_call.1} parent=11 // pred_region
          _
        $region16: #{tpu_custom_call.1} parent=11 // pred_fallthru
          _
        // Predicated region
        $region17: #{tpu_custom_call.1} parent=11 // pred_check
          %p258 = pneg %p189
        $region18: #{tpu_custom_call.1} parent=11 // pred_check_branch
          %260 = sbr.rel (%p258) target = $region20
        $region19: #{tpu_custom_call.1} parent=11 // pred_region
          _
        $region20: #{tpu_custom_call.1} parent=11 // pred_fallthru
          _
        // Predicated region
        $region21: #{tpu_custom_call.1} parent=11 // pred_check
          %p261 = pneg %p210
        $region22: #{tpu_custom_call.1} parent=11 // pred_check_branch
          %263 = sbr.rel (%p261) target = $region24
        $region23: #{tpu_custom_call.1} parent=11 // pred_region
          _
        $region24: #{tpu_custom_call.1} parent=11 // pred_fallthru
          _
      $region12: #{tpu_custom_call.1} parent=5 // pred_fallthru
        _
      %p264 = scmp.lt.s32.totalorder %s16, 8
      // Predicated region
      $region25: #{tpu_custom_call.1} parent=5 // pred_check
        %p265 = pneg %p264
      $region26: #{tpu_custom_call.1} parent=5 // pred_check_branch
        %267 = sbr.rel (%p265) target = $region28
      $region27: #{tpu_custom_call.1} parent=5 // pred_region
        // Predicated region
        $region29: #{tpu_custom_call.1} parent=27 // pred_check
          %p268 = pneg %p57
        $region30: #{tpu_custom_call.1} parent=27 // pred_check_branch
          %270 = sbr.rel (%p268) target = $region32
        $region31: #{tpu_custom_call.1} parent=27 // pred_region
          %p271 = scmp.lt.s32.totalorder %s23, 1
          %s272 = scalar_select %p271, %s23, 1
          %p273 = scmp.lt.s32.totalorder %s25, 1
          %s274 = scalar_select %p273, %s25, 1
          %s275 = smul.addr %s272, 2
          %s276 = sadd.s32 %s274, %s275
          %s277 = smul.addr %s276, 8
          %s278 = scalar_lea.vmem %s0, %s277
        $region32: #{tpu_custom_call.1} parent=27 // pred_fallthru
          _
        // Predicated region
        $region33: #{tpu_custom_call.1} parent=27 // pred_check
          %p279 = pneg %p85
        $region34: #{tpu_custom_call.1} parent=27 // pred_check_branch
          %281 = sbr.rel (%p279) target = $region36
        $region35: #{tpu_custom_call.1} parent=27 // pred_region
          %p282 = scmp.lt.s32.totalorder %s23, 1
          %s283 = scalar_select %p282, %s23, 1
          %p284 = scmp.lt.s32.totalorder %s24, 1
          %s285 = scalar_select %p284, %s24, 1
          %s286 = smul.addr %s283, 2
          %s287 = sadd.s32 %s285, %s286
          %s288 = smul.addr %s287, 8
          %s289 = scalar_lea.vmem %s1, %s288
        $region36: #{tpu_custom_call.1} parent=27 // pred_fallthru
          _
        // Predicated region
        $region37: #{tpu_custom_call.1} parent=27 // pred_check
          %p290 = pneg %p113
        $region38: #{tpu_custom_call.1} parent=27 // pred_check_branch
          %292 = sbr.rel (%p290) target = $region40
        $region39: #{tpu_custom_call.1} parent=27 // pred_region
          %p293 = scmp.lt.s32.totalorder %s23, 1
          %s294 = scalar_select %p293, %s23, 1
          %p295 = scmp.lt.s32.totalorder %s25, 1
          %s296 = scalar_select %p295, %s25, 1
          %s297 = smul.addr %s294, 2
          %s298 = sadd.s32 %s296, %s297
          %s299 = smul.addr %s298, 8
          %s300 = scalar_lea.vmem %s2, %s299
        $region40: #{tpu_custom_call.1} parent=27 // pred_fallthru
          _
        // Predicated region
        $region41: #{tpu_custom_call.1} parent=27 // pred_check
          %p301 = pneg %p141
        $region42: #{tpu_custom_call.1} parent=27 // pred_check_branch
          %303 = sbr.rel (%p301) target = $region44
        $region43: #{tpu_custom_call.1} parent=27 // pred_region
          %p304 = scmp.lt.s32.totalorder %s23, 1
          %s305 = scalar_select %p304, %s23, 1
          %p306 = scmp.lt.s32.totalorder %s24, 1
          %s307 = scalar_select %p306, %s24, 1
          %s308 = smul.addr %s305, 2
          %s309 = sadd.s32 %s307, %s308
          %s310 = smul.addr %s309, 8
          %s311 = scalar_lea.vmem %s3, %s310
        $region44: #{tpu_custom_call.1} parent=27 // pred_fallthru
          _
      $region28: #{tpu_custom_call.1} parent=5 // pred_fallthru
        _
      %p312 = scmp.le.s32.totalorder 1, %s16
      %p313 = scmp.lt.s32.totalorder %s16, 9
      %p314 = pnand %p312, %p313
      %p315 = pneg %p314
      // Predicated region
      $region45: #{tpu_custom_call.1} parent=5 // pred_check
        _
      $region46: #{tpu_custom_call.1} parent=5 // pred_check_branch
        %317 = sbr.rel (%p314) target = $region48
      $region47: #{tpu_custom_call.1} parent=5 // pred_region
        %s318 = ssub.s32 %s16, 1
        %p319 = scmp.lt.s32.totalorder %s26, 1
        %s320 = scalar_select %p319, %s26, 1
        %p321 = scmp.lt.s32.totalorder %s28, 1
        %s322 = scalar_select %p321, %s28, 1
        %s323 = smul.addr %s320, 2
        %s324 = sadd.s32 %s322, %s323
        %s325 = smul.addr %s324, 8
        %s326 = scalar_lea.vmem %s0, %s325
        %p327 = pneg %p63
        %p328 = pneg %p60
        %p329 = scmp.lt.s32.totalorder %s26, 1
        %s330 = scalar_select %p329, %s26, 1
        %p331 = scmp.lt.s32.totalorder %s27, 1
        %s332 = scalar_select %p331, %s27, 1
        %s333 = smul.addr %s330, 2
        %s334 = sadd.s32 %s332, %s333
        %s335 = smul.addr %s334, 8
        %s336 = scalar_lea.vmem %s1, %s335
        %p337 = pneg %p91
        %p338 = pneg %p88
        %p339 = scmp.lt.s32.totalorder %s26, 1
        %s340 = scalar_select %p339, %s26, 1
        %p341 = scmp.lt.s32.totalorder %s28, 1
        %s342 = scalar_select %p341, %s28, 1
        %s343 = smul.addr %s340, 2
        %s344 = sadd.s32 %s342, %s343
        %s345 = smul.addr %s344, 8
        %s346 = scalar_lea.vmem %s2, %s345
        %p347 = pneg %p119
        %p348 = pneg %p116
        %p349 = scmp.lt.s32.totalorder %s26, 1
        %s350 = scalar_select %p349, %s26, 1
        %p351 = scmp.lt.s32.totalorder %s27, 1
        %s352 = scalar_select %p351, %s27, 1
        %s353 = smul.addr %s350, 2
        %s354 = sadd.s32 %s352, %s353
        %s355 = smul.addr %s354, 8
        %s356 = scalar_lea.vmem %s3, %s355
        %p357 = pneg %p147
        %p358 = pneg %p144
        %p359 = pneg %p168
        %p360 = pneg %p165
        %p361 = pneg %p189
        %p362 = pneg %p186
        %p363 = pneg %p210
        %p364 = pneg %p207
        %p365 = pneg %p240
        %p366 = pneg %p237
        %s367 = sand.u32 %s227, 1
        %s368 = scalar_lea.sflag [#allocation3], %s367
        %s369 = sand.u32 %s227, 1
        %s370 = smul.addr %s369, 64
        %s371 = scalar_lea.vmem [#allocation2], %s370
        %p372 = scmp.lt.s32.totalorder %s26, 1
        %s373 = scalar_select %p372, %s26, 1
        %p374 = scmp.lt.s32.totalorder %s28, 1
        %s375 = scalar_select %p374, %s28, 1
        %s376 = smul.addr %s373, 2
        %s377 = sadd.s32 %s375, %s376
        %s378 = smul.addr %s377, 8
        %s379 = scalar_lea.vmem %s0, %s378
        %p380 = scmp.lt.s32.totalorder %s26, 1
        %s381 = scalar_select %p380, %s26, 1
        %p382 = scmp.lt.s32.totalorder %s27, 1
        %s383 = scalar_select %p382, %s27, 1
        %s384 = smul.addr %s381, 2
        %s385 = sadd.s32 %s383, %s384
        %s386 = smul.addr %s385, 8
        %s387 = scalar_lea.vmem %s1, %s386
        %p388 = scmp.lt.s32.totalorder %s26, 1
        %s389 = scalar_select %p388, %s26, 1
        %p390 = scmp.lt.s32.totalorder %s28, 1
        %s391 = scalar_select %p390, %s28, 1
        %s392 = smul.addr %s389, 2
        %s393 = sadd.s32 %s391, %s392
        %s394 = smul.addr %s393, 8
        %s395 = scalar_lea.vmem %s2, %s394
        %p396 = scmp.lt.s32.totalorder %s26, 1
        %s397 = scalar_select %p396, %s26, 1
        %p398 = scmp.lt.s32.totalorder %s27, 1
        %s399 = scalar_select %p398, %s27, 1
        %s400 = smul.addr %s397, 2
        %s401 = sadd.s32 %s399, %s400
        %s402 = smul.addr %s401, 8
        %s403 = scalar_lea.vmem %s3, %s402
        %s404 = smul.u32 8, %s27
        %v405 = vld [vmem:[%s379] sm:$0xff]
        %v406 = vld [vmem:[%s387] sm:$0xff]
        %v407 = vld [vmem:[%s395] sm:$0xff]
        %v408 = vld [vmem:[%s403] sm:$0xff]
        %v410 = vcombine.high %v406, %v406
        %v412 = vunpack.c.l.s4 1966171168
        %v413 = vunpack.c.0.s8 %v412
        %v414 = vlaneseq
        %v415 = vshrl.u32 %v414, 7
        %v416 = vsub.s32 %v413, %v415
        %v417 = vrot.slane %v406, %v416
        %v419 = vunpack.c.l.s4 1966171168
        %v420 = vunpack.c.0.s8 %v419
        %v421 = vlaneseq
        %v422 = vshrl.u32 %v421, 7
        %v423 = vsub.s32 %v420, %v422
        %v424 = vrot.slane %v410, %v423
        %v425 = vcombine.high %v417, %v417
        %v426 = vcombine.high %v424, %v424
        %v428 = vunpack.c.l.s4 1966171168
        %v429 = vunpack.c.0.s8 %v428
        %v430 = vlaneseq
        %v431 = vshrl.u32 %v430, 7
        %v432 = vsub.s32 %v429, %v431
        %v433 = vrot.slane %v417, %v432
        %v435 = vunpack.c.l.s4 1966171168
        %v436 = vunpack.c.0.s8 %v435
        %v437 = vlaneseq
        %v438 = vshrl.u32 %v437, 7
        %v439 = vsub.s32 %v436, %v438
        %v440 = vrot.slane %v424, %v439
        %v442 = vunpack.c.l.s4 1966171168
        %v443 = vunpack.c.0.s8 %v442
        %v444 = vlaneseq
        %v445 = vshrl.u32 %v444, 7
        %v446 = vsub.s32 %v443, %v445
        %v447 = vrot.slane %v425, %v446
        %v449 = vunpack.c.l.s4 1966171168
        %v450 = vunpack.c.0.s8 %v449
        %v451 = vlaneseq
        %v452 = vshrl.u32 %v451, 7
        %v453 = vsub.s32 %v450, %v452
        %v454 = vrot.slane %v426, %v453
        %v455 = vcombine.high %v433, %v433
        %v456 = vcombine.high %v440, %v440
        %v457 = vcombine.high %v447, %v447
        %v458 = vcombine.high %v454, %v454
        %v459 = vlaneseq
        %v460 = vshrl.u32 %v459, 7
        %v461 = vsub.s32 0, %v460
        %v462 = vrot.slane %v433, %v461
        %v463 = vlaneseq
        %v464 = vshrl.u32 %v463, 7
        %v465 = vsub.s32 0, %v464
        %v466 = vrot.slane %v447, %v465
        %v467 = vlaneseq
        %v468 = vshrl.u32 %v467, 7
        %v469 = vsub.s32 0, %v468
        %v470 = vrot.slane %v455, %v469
        %v471 = vlaneseq
        %v472 = vshrl.u32 %v471, 7
        %v473 = vsub.s32 0, %v472
        %v474 = vrot.slane %v457, %v473
        %v475 = vlaneseq
        %v476 = vshrl.u32 %v475, 7
        %v477 = vsub.s32 0, %v476
        %v478 = vrot.slane %v440, %v477
        %v479 = vlaneseq
        %v480 = vshrl.u32 %v479, 7
        %v481 = vsub.s32 0, %v480
        %v482 = vrot.slane %v454, %v481
        %v483 = vlaneseq
        %v484 = vshrl.u32 %v483, 7
        %v485 = vsub.s32 0, %v484
        %v486 = vrot.slane %v456, %v485
        %v487 = vlaneseq
        %v488 = vshrl.u32 %v487, 7
        %v489 = vsub.s32 0, %v488
        %v490 = vrot.slane %v458, %v489
        %v499 = vmul.f32 %v462, %v405
        %v500 = vmul.f32 %v466, %v405
        %v501 = vmul.f32 %v470, %v405
        %v502 = vmul.f32 %v474, %v405
        %v503 = vmul.f32 %v478, %v405
        %v504 = vmul.f32 %v482, %v405
        %v505 = vmul.f32 %v486, %v405
        %v506 = vmul.f32 %v490, %v405
        %v507 = vld [vmem:[%s4] sm:$0xff]
        %v509 = vcombine.high %v408, %v408
        %v511 = vunpack.c.l.s4 1966171168
        %v512 = vunpack.c.0.s8 %v511
        %v513 = vlaneseq
        %v514 = vshrl.u32 %v513, 7
        %v515 = vsub.s32 %v512, %v514
        %v516 = vrot.slane %v408, %v515
        %v518 = vunpack.c.l.s4 1966171168
        %v519 = vunpack.c.0.s8 %v518
        %v520 = vlaneseq
        %v521 = vshrl.u32 %v520, 7
        %v522 = vsub.s32 %v519, %v521
        %v523 = vrot.slane %v509, %v522
        %v524 = vcombine.high %v516, %v516
        %v525 = vcombine.high %v523, %v523
        %v527 = vunpack.c.l.s4 1966171168
        %v528 = vunpack.c.0.s8 %v527
        %v529 = vlaneseq
        %v530 = vshrl.u32 %v529, 7
        %v531 = vsub.s32 %v528, %v530
        %v532 = vrot.slane %v516, %v531
        %v534 = vunpack.c.l.s4 1966171168
        %v535 = vunpack.c.0.s8 %v534
        %v536 = vlaneseq
        %v537 = vshrl.u32 %v536, 7
        %v538 = vsub.s32 %v535, %v537
        %v539 = vrot.slane %v523, %v538
        %v541 = vunpack.c.l.s4 1966171168
        %v542 = vunpack.c.0.s8 %v541
        %v543 = vlaneseq
        %v544 = vshrl.u32 %v543, 7
        %v545 = vsub.s32 %v542, %v544
        %v546 = vrot.slane %v524, %v545
        %v548 = vunpack.c.l.s4 1966171168
        %v549 = vunpack.c.0.s8 %v548
        %v550 = vlaneseq
        %v551 = vshrl.u32 %v550, 7
        %v552 = vsub.s32 %v549, %v551
        %v553 = vrot.slane %v525, %v552
        %v554 = vcombine.high %v532, %v532
        %v555 = vcombine.high %v539, %v539
        %v556 = vcombine.high %v546, %v546
        %v557 = vcombine.high %v553, %v553
        %v558 = vlaneseq
        %v559 = vshrl.u32 %v558, 7
        %v560 = vsub.s32 0, %v559
        %v561 = vrot.slane %v532, %v560
        %v562 = vlaneseq
        %v563 = vshrl.u32 %v562, 7
        %v564 = vsub.s32 0, %v563
        %v565 = vrot.slane %v546, %v564
        %v566 = vlaneseq
        %v567 = vshrl.u32 %v566, 7
        %v568 = vsub.s32 0, %v567
        %v569 = vrot.slane %v554, %v568
        %v570 = vlaneseq
        %v571 = vshrl.u32 %v570, 7
        %v572 = vsub.s32 0, %v571
        %v573 = vrot.slane %v556, %v572
        %v574 = vlaneseq
        %v575 = vshrl.u32 %v574, 7
        %v576 = vsub.s32 0, %v575
        %v577 = vrot.slane %v539, %v576
        %v578 = vlaneseq
        %v579 = vshrl.u32 %v578, 7
        %v580 = vsub.s32 0, %v579
        %v581 = vrot.slane %v553, %v580
        %v582 = vlaneseq
        %v583 = vshrl.u32 %v582, 7
        %v584 = vsub.s32 0, %v583
        %v585 = vrot.slane %v555, %v584
        %v586 = vlaneseq
        %v587 = vshrl.u32 %v586, 7
        %v588 = vsub.s32 0, %v587
        %v589 = vrot.slane %v557, %v588
        %v598 = vsub.f32 %v407, %v561
        %v599 = vsub.f32 %v407, %v565
        %v600 = vsub.f32 %v407, %v569
        %v601 = vsub.f32 %v407, %v573
        %v602 = vsub.f32 %v407, %v577
        %v603 = vsub.f32 %v407, %v581
        %v604 = vsub.f32 %v407, %v585
        %v605 = vsub.f32 %v407, %v589
        %vm606 = vcmask 64512
        %v608 = vsel %vm606, %v499, 0
        %v611 = vsel %vm606, %v500, 0
        %v614 = vsel %vm606, %v501, 0
        %v617 = vsel %vm606, %v502, 0
        %v620 = vsel %vm606, %v503, 0
        %v623 = vsel %vm606, %v504, 0
        %v626 = vsel %vm606, %v505, 0
        %v629 = vsel %vm606, %v506, 0
        %631 = vmatprep.subr.mxu0 0.0
        %632 = vmatpush1.msra.mxu0 0.0
        %633 = vmatprep.subr.mxu0 0.0
        %634 = vmatpush1.msra.mxu0 0.0
        %635 = vmatprep.subr.mxu0 0.0
        %636 = vmatpush1.msra.mxu0 0.0
        %637 = vmatprep.subr.mxu0 0.0
        %638 = vmatpush1.msra.mxu0 0.0
        %639 = vmatprep.subr.mxu0 0.0
        %640 = vmatpush1.msra.mxu0 0.0
        %641 = vmatprep.subr.mxu0 0.0
        %642 = vmatpush1.msra.mxu0 0.0
        %643 = vmatprep.subr.mxu0 0.0
        %644 = vmatpush1.msra.mxu0 0.0
        %645 = vmatprep.subr.mxu0 0.0
        %646 = vmatpush1.msra.mxu0 0.0
        %647 = vmatprep.subr.mxu0 0.0
        %648 = vmatpush1.msra.mxu0 0.0
        %649 = vmatprep.subr.mxu0 0.0
        %650 = vmatpush1.msra.mxu0 0.0
        %651 = vmatprep.subr.mxu0 0.0
        %652 = vmatpush1.msra.mxu0 0.0
        %653 = vmatprep.subr.mxu0 0.0
        %654 = vmatpush1.msra.mxu0 0.0
        %655 = vmatprep.subr.mxu0 0.0
        %656 = vmatpush1.msra.mxu0 0.0
        %657 = vmatprep.subr.mxu0 0.0
        %658 = vmatpush1.msra.mxu0 0.0
        %659 = vmatprep.subr.mxu0 0.0
        %660 = vmatpush1.msra.mxu0 0.0
        %661 = vmatprep.subr.mxu0 0.0
        %662 = vmatpush1.msra.mxu0 %v507
        %663 = vmatprep.subr.mxu0 0.0
        %664 = vmatpush2.msra.mxu0 0.0
        %665 = vmatprep.subr.mxu0 0.0
        %666 = vmatpush2.msra.mxu0 0.0
        %667 = vmatprep.subr.mxu0 0.0
        %668 = vmatpush2.msra.mxu0 0.0
        %669 = vmatprep.subr.mxu0 0.0
        %670 = vmatpush2.msra.mxu0 0.0
        %671 = vmatprep.subr.mxu0 0.0
        %672 = vmatpush2.msra.mxu0 0.0
        %673 = vmatprep.subr.mxu0 0.0
        %674 = vmatpush2.msra.mxu0 0.0
        %675 = vmatprep.subr.mxu0 0.0
        %676 = vmatpush2.msra.mxu0 0.0
        %677 = vmatprep.subr.mxu0 0.0
        %678 = vmatpush2.msra.mxu0 0.0
        %679 = vmatprep.subr.mxu0 0.0
        %680 = vmatpush2.msra.mxu0 0.0
        %681 = vmatprep.subr.mxu0 0.0
        %682 = vmatpush2.msra.mxu0 0.0
        %683 = vmatprep.subr.mxu0 0.0
        %684 = vmatpush2.msra.mxu0 0.0
        %685 = vmatprep.subr.mxu0 0.0
        %686 = vmatpush2.msra.mxu0 0.0
        %687 = vmatprep.subr.mxu0 0.0
        %688 = vmatpush2.msra.mxu0 0.0
        %689 = vmatprep.subr.mxu0 0.0
        %690 = vmatpush2.msra.mxu0 0.0
        %691 = vmatprep.subr.mxu0 0.0
        %692 = vmatpush2.msra.mxu0 0.0
        %693 = vmatprep.subr.mxu0 0.0
        %694 = vmatpush2.msra.mxu0 0.0
        %695 = vmatprep.mubr.f32.mxu0 0.0
        %696 = vmatmul.mubr.f32.gmra.mxu0 %v608
        %v697 = vpop.f32.mrf.mxu0
        %v698 = vadd.f32 %v598, %v697
        %v699 = vpop.f32.mrf.mxu0
        %700 = vmatprep.mubr.f32.mxu0 0.0
        %701 = vmatmul.mubr.f32.gmra.mxu0 %v611
        %v702 = vpop.f32.mrf.mxu0
        %v703 = vadd.f32 %v599, %v702
        %v704 = vpop.f32.mrf.mxu0
        %705 = vmatprep.mubr.f32.mxu0 0.0
        %706 = vmatmul.mubr.f32.gmra.mxu0 %v614
        %v707 = vpop.f32.mrf.mxu0
        %v708 = vadd.f32 %v600, %v707
        %v709 = vpop.f32.mrf.mxu0
        %710 = vmatprep.mubr.f32.mxu0 0.0
        %711 = vmatmul.mubr.f32.gmra.mxu0 %v617
        %v712 = vpop.f32.mrf.mxu0
        %v713 = vadd.f32 %v601, %v712
        %v714 = vpop.f32.mrf.mxu0
        %715 = vmatprep.mubr.f32.mxu0 0.0
        %716 = vmatmul.mubr.f32.gmra.mxu0 %v620
        %v717 = vpop.f32.mrf.mxu0
        %v718 = vadd.f32 %v602, %v717
        %v719 = vpop.f32.mrf.mxu0
        %720 = vmatprep.mubr.f32.mxu0 0.0
        %721 = vmatmul.mubr.f32.gmra.mxu0 %v623
        %v722 = vpop.f32.mrf.mxu0
        %v723 = vadd.f32 %v603, %v722
        %v724 = vpop.f32.mrf.mxu0
        %725 = vmatprep.mubr.f32.mxu0 0.0
        %726 = vmatmul.mubr.f32.gmra.mxu0 %v626
        %v727 = vpop.f32.mrf.mxu0
        %v728 = vadd.f32 %v604, %v727
        %v729 = vpop.f32.mrf.mxu0
        %730 = vmatprep.mubr.f32.mxu0 0.0
        %731 = vmatmul.mubr.f32.gmra.mxu0 %v629
        %v732 = vpop.f32.mrf.mxu0
        %v733 = vadd.f32 %v605, %v732
        %v734 = vpop.f32.mrf.mxu0
        %735 = vdwg.mxu0
        %v736 = vand.u32 2147483647, %v698
        %v737 = vand.u32 2147483647, %v703
        %v738 = vand.u32 2147483647, %v708
        %v739 = vand.u32 2147483647, %v713
        %v740 = vand.u32 2147483647, %v718
        %v741 = vand.u32 2147483647, %v723
        %v742 = vand.u32 2147483647, %v728
        %v743 = vand.u32 2147483647, %v733
        %v744 = vmul.f32 %v736, 0.70710677
        %v745 = vmul.f32 %v737, 0.70710677
        %v746 = vmul.f32 %v738, 0.70710677
        %v747 = vmul.f32 %v739, 0.70710677
        %v748 = vmul.f32 %v740, 0.70710677
        %v749 = vmul.f32 %v741, 0.70710677
        %v750 = vmul.f32 %v742, 0.70710677
        %v751 = vmul.f32 %v743, 0.70710677
        %v752 = vmul.f32 %v744, 0.3275911
        %v753 = vmul.f32 %v745, 0.3275911
        %v754 = vmul.f32 %v746, 0.3275911
        %v755 = vmul.f32 %v747, 0.3275911
        %v756 = vmul.f32 %v748, 0.3275911
        %v757 = vmul.f32 %v749, 0.3275911
        %v758 = vmul.f32 %v750, 0.3275911
        %v759 = vmul.f32 %v751, 0.3275911
        %v760 = vadd.f32 %v752, 1.0
        %v761 = vadd.f32 %v753, 1.0
        %v762 = vadd.f32 %v754, 1.0
        %v763 = vadd.f32 %v755, 1.0
        %v764 = vadd.f32 %v756, 1.0
        %v765 = vadd.f32 %v757, 1.0
        %v766 = vadd.f32 %v758, 1.0
        %v767 = vadd.f32 %v759, 1.0
        %v768 = vrcp.pop %v760
        %v769 = vmul.f32 1.0, %v768
        %v770 = vrcp.pop %v761
        %v771 = vmul.f32 1.0, %v770
        %v772 = vrcp.pop %v762
        %v773 = vmul.f32 1.0, %v772
        %v774 = vrcp.pop %v763
        %v775 = vmul.f32 1.0, %v774
        %v776 = vrcp.pop %v764
        %v777 = vmul.f32 1.0, %v776
        %v778 = vrcp.pop %v765
        %v779 = vmul.f32 1.0, %v778
        %v780 = vrcp.pop %v766
        %v781 = vmul.f32 1.0, %v780
        %v782 = vrcp.pop %v767
        %v783 = vmul.f32 1.0, %v782
        %v784 = vmul.f32 %v769, 0.5307027
        %v785 = vmul.f32 %v771, 0.5307027
        %v786 = vmul.f32 %v773, 0.5307027
        %v787 = vmul.f32 %v775, 0.5307027
        %v788 = vmul.f32 %v777, 0.5307027
        %v789 = vmul.f32 %v779, 0.5307027
        %v790 = vmul.f32 %v781, 0.5307027
        %v791 = vmul.f32 %v783, 0.5307027
        %v792 = vadd.f32 %v784, -0.72657603
        %v793 = vadd.f32 %v785, -0.72657603
        %v794 = vadd.f32 %v786, -0.72657603
        %v795 = vadd.f32 %v787, -0.72657603
        %v796 = vadd.f32 %v788, -0.72657603
        %v797 = vadd.f32 %v789, -0.72657603
        %v798 = vadd.f32 %v790, -0.72657603
        %v799 = vadd.f32 %v791, -0.72657603
        %v800 = vmul.f32 %v792, %v769
        %v801 = vmul.f32 %v793, %v771
        %v802 = vmul.f32 %v794, %v773
        %v803 = vmul.f32 %v795, %v775
        %v804 = vmul.f32 %v796, %v777
        %v805 = vmul.f32 %v797, %v779
        %v806 = vmul.f32 %v798, %v781
        %v807 = vmul.f32 %v799, %v783
        %v808 = vadd.f32 %v800, 0.7107069
        %v809 = vadd.f32 %v801, 0.7107069
        %v810 = vadd.f32 %v802, 0.7107069
        %v811 = vadd.f32 %v803, 0.7107069
        %v812 = vadd.f32 %v804, 0.7107069
        %v813 = vadd.f32 %v805, 0.7107069
        %v814 = vadd.f32 %v806, 0.7107069
        %v815 = vadd.f32 %v807, 0.7107069
        %v816 = vmul.f32 %v808, %v769
        %v817 = vmul.f32 %v809, %v771
        %v818 = vmul.f32 %v810, %v773
        %v819 = vmul.f32 %v811, %v775
        %v820 = vmul.f32 %v812, %v777
        %v821 = vmul.f32 %v813, %v779
        %v822 = vmul.f32 %v814, %v781
        %v823 = vmul.f32 %v815, %v783
        %v824 = vadd.f32 %v816, -0.14224836
        %v825 = vadd.f32 %v817, -0.14224836
        %v826 = vadd.f32 %v818, -0.14224836
        %v827 = vadd.f32 %v819, -0.14224836
        %v828 = vadd.f32 %v820, -0.14224836
        %v829 = vadd.f32 %v821, -0.14224836
        %v830 = vadd.f32 %v822, -0.14224836
        %v831 = vadd.f32 %v823, -0.14224836
        %v832 = vmul.f32 %v824, %v769
        %v833 = vmul.f32 %v825, %v771
        %v834 = vmul.f32 %v826, %v773
        %v835 = vmul.f32 %v827, %v775
        %v836 = vmul.f32 %v828, %v777
        %v837 = vmul.f32 %v829, %v779
        %v838 = vmul.f32 %v830, %v781
        %v839 = vmul.f32 %v831, %v783
        %v840 = vadd.f32 %v832, 0.1274148
        %v841 = vadd.f32 %v833, 0.1274148
        %v842 = vadd.f32 %v834, 0.1274148
        %v843 = vadd.f32 %v835, 0.1274148
        %v844 = vadd.f32 %v836, 0.1274148
        %v845 = vadd.f32 %v837, 0.1274148
        %v846 = vadd.f32 %v838, 0.1274148
        %v847 = vadd.f32 %v839, 0.1274148
        %v848 = vmul.f32 %v840, %v769
        %v849 = vmul.f32 %v841, %v771
        %v850 = vmul.f32 %v842, %v773
        %v851 = vmul.f32 %v843, %v775
        %v852 = vmul.f32 %v844, %v777
        %v853 = vmul.f32 %v845, %v779
        %v854 = vmul.f32 %v846, %v781
        %v855 = vmul.f32 %v847, %v783
        %v856 = vmax.f32 %v698, 0.0
        %v857 = vmax.f32 %v703, 0.0
        %v858 = vmax.f32 %v708, 0.0
        %v859 = vmax.f32 %v713, 0.0
        %v860 = vmax.f32 %v718, 0.0
        %v861 = vmax.f32 %v723, 0.0
        %v862 = vmax.f32 %v728, 0.0
        %v863 = vmax.f32 %v733, 0.0
        %v864 = vmul.f32 %v736, %v848
        %v865 = vmul.f32 %v737, %v849
        %v866 = vmul.f32 %v738, %v850
        %v867 = vmul.f32 %v739, %v851
        %v868 = vmul.f32 %v740, %v852
        %v869 = vmul.f32 %v741, %v853
        %v870 = vmul.f32 %v742, %v854
        %v871 = vmul.f32 %v743, %v855
        %v872 = vsub.f32 0.0, %v744
        %v873 = vsub.f32 0.0, %v745
        %v874 = vsub.f32 0.0, %v746
        %v875 = vsub.f32 0.0, %v747
        %v876 = vsub.f32 0.0, %v748
        %v877 = vsub.f32 0.0, %v749
        %v878 = vsub.f32 0.0, %v750
        %v879 = vsub.f32 0.0, %v751
        %v880 = vmul.f32 %v872, %v744
        %v881 = vmul.f32 %v873, %v745
        %v882 = vmul.f32 %v874, %v746
        %v883 = vmul.f32 %v875, %v747
        %v884 = vmul.f32 %v876, %v748
        %v885 = vmul.f32 %v877, %v749
        %v886 = vmul.f32 %v878, %v750
        %v887 = vmul.f32 %v879, %v751
        %v888 = vmul.f32 %v880, 1.442695
        %v889 = vpow.pop %v888
        %v890 = vmul.f32 %v881, 1.442695
        %v891 = vpow.pop %v890
        %v892 = vmul.f32 %v882, 1.442695
        %v893 = vpow.pop %v892
        %v894 = vmul.f32 %v883, 1.442695
        %v895 = vpow.pop %v894
        %v896 = vmul.f32 %v884, 1.442695
        %v897 = vpow.pop %v896
        %v898 = vmul.f32 %v885, 1.442695
        %v899 = vpow.pop %v898
        %v900 = vmul.f32 %v886, 1.442695
        %v901 = vpow.pop %v900
        %v902 = vmul.f32 %v887, 1.442695
        %v903 = vpow.pop %v902
        %v904 = vmul.f32 %v864, %v889
        %v905 = vmul.f32 %v865, %v891
        %v906 = vmul.f32 %v866, %v893
        %v907 = vmul.f32 %v867, %v895
        %v908 = vmul.f32 %v868, %v897
        %v909 = vmul.f32 %v869, %v899
        %v910 = vmul.f32 %v870, %v901
        %v911 = vmul.f32 %v871, %v903
        %v912 = vsub.f32 %v856, %v904
        %v913 = vsub.f32 %v857, %v905
        %v914 = vsub.f32 %v858, %v906
        %v915 = vsub.f32 %v859, %v907
        %v916 = vsub.f32 %v860, %v908
        %v917 = vsub.f32 %v861, %v909
        %v918 = vsub.f32 %v862, %v910
        %v919 = vsub.f32 %v863, %v911
        %vm920 = vcmask 261120
        %v921 = vsel %vm920, %v912, 0.0
        %922 = vadd.xlane.f32.xlu0 %v921
        %v923 = vpop.xlane.xlu0 %922
        %v924 = vsel %vm920, %v913, 0.0
        %925 = vadd.xlane.f32.xlu0 %v924
        %v926 = vpop.xlane.xlu0 %925
        %v927 = vsel %vm920, %v914, 0.0
        %928 = vadd.xlane.f32.xlu0 %v927
        %v929 = vpop.xlane.xlu0 %928
        %v930 = vsel %vm920, %v915, 0.0
        %931 = vadd.xlane.f32.xlu0 %v930
        %v932 = vpop.xlane.xlu0 %931
        %v933 = vsel %vm920, %v916, 0.0
        %934 = vadd.xlane.f32.xlu0 %v933
        %v935 = vpop.xlane.xlu0 %934
        %v936 = vsel %vm920, %v917, 0.0
        %937 = vadd.xlane.f32.xlu0 %v936
        %v938 = vpop.xlane.xlu0 %937
        %v939 = vsel %vm920, %v918, 0.0
        %940 = vadd.xlane.f32.xlu0 %v939
        %v941 = vpop.xlane.xlu0 %940
        %v942 = vsel %vm920, %v919, 0.0
        %943 = vadd.xlane.f32.xlu0 %v942
        %v944 = vpop.xlane.xlu0 %943
        %v945 = vrcp.pop 32.0
        %v946 = vmul.f32 %v923, %v945
        %v947 = vmul.f32 %v926, %v945
        %v948 = vmul.f32 %v929, %v945
        %v949 = vmul.f32 %v932, %v945
        %v950 = vmul.f32 %v935, %v945
        %v951 = vmul.f32 %v938, %v945
        %v952 = vmul.f32 %v941, %v945
        %v953 = vmul.f32 %v944, %v945
        %v954 = vmul.f32 %v912, %v912
        %v955 = vmul.f32 %v913, %v913
        %v956 = vmul.f32 %v914, %v914
        %v957 = vmul.f32 %v915, %v915
        %v958 = vmul.f32 %v916, %v916
        %v959 = vmul.f32 %v917, %v917
        %v960 = vmul.f32 %v918, %v918
        %v961 = vmul.f32 %v919, %v919
        %v962 = vsel %vm920, %v954, 0.0
        %963 = vadd.xlane.f32.xlu0 %v962
        %v964 = vpop.xlane.xlu0 %963
        %v965 = vsel %vm920, %v955, 0.0
        %966 = vadd.xlane.f32.xlu0 %v965
        %v967 = vpop.xlane.xlu0 %966
        %v968 = vsel %vm920, %v956, 0.0
        %969 = vadd.xlane.f32.xlu0 %v968
        %v970 = vpop.xlane.xlu0 %969
        %v971 = vsel %vm920, %v957, 0.0
        %972 = vadd.xlane.f32.xlu0 %v971
        %v973 = vpop.xlane.xlu0 %972
        %v974 = vsel %vm920, %v958, 0.0
        %975 = vadd.xlane.f32.xlu0 %v974
        %v976 = vpop.xlane.xlu0 %975
        %v977 = vsel %vm920, %v959, 0.0
        %978 = vadd.xlane.f32.xlu0 %v977
        %v979 = vpop.xlane.xlu0 %978
        %v980 = vsel %vm920, %v960, 0.0
        %981 = vadd.xlane.f32.xlu0 %v980
        %v982 = vpop.xlane.xlu0 %981
        %v983 = vsel %vm920, %v961, 0.0
        %984 = vadd.xlane.f32.xlu0 %v983
        %v985 = vpop.xlane.xlu0 %984
        %v986 = vmul.f32 %v964, %v945
        %v987 = vmul.f32 %v967, %v945
        %v988 = vmul.f32 %v970, %v945
        %v989 = vmul.f32 %v973, %v945
        %v990 = vmul.f32 %v976, %v945
        %v991 = vmul.f32 %v979, %v945
        %v992 = vmul.f32 %v982, %v945
        %v993 = vmul.f32 %v985, %v945
        %v994 = vsub.f32 %v912, %v946
        %v995 = vsub.f32 %v913, %v947
        %v996 = vsub.f32 %v914, %v948
        %v997 = vsub.f32 %v915, %v949
        %v998 = vsub.f32 %v916, %v950
        %v999 = vsub.f32 %v917, %v951
        %v1000 = vsub.f32 %v918, %v952
        %v1001 = vsub.f32 %v919, %v953
        %v1002 = vmul.f32 %v946, %v946
        %v1003 = vmul.f32 %v947, %v947
        %v1004 = vmul.f32 %v948, %v948
        %v1005 = vmul.f32 %v949, %v949
        %v1006 = vmul.f32 %v950, %v950
        %v1007 = vmul.f32 %v951, %v951
        %v1008 = vmul.f32 %v952, %v952
        %v1009 = vmul.f32 %v953, %v953
        %v1010 = vsub.f32 %v986, %v1002
        %v1011 = vsub.f32 %v987, %v1003
        %v1012 = vsub.f32 %v988, %v1004
        %v1013 = vsub.f32 %v989, %v1005
        %v1014 = vsub.f32 %v990, %v1006
        %v1015 = vsub.f32 %v991, %v1007
        %v1016 = vsub.f32 %v992, %v1008
        %v1017 = vsub.f32 %v993, %v1009
        %v1018 = vadd.f32 %v1010, 1e-05
        %v1019 = vadd.f32 %v1011, 1e-05
        %v1020 = vadd.f32 %v1012, 1e-05
        %v1021 = vadd.f32 %v1013, 1e-05
        %v1022 = vadd.f32 %v1014, 1e-05
        %v1023 = vadd.f32 %v1015, 1e-05
        %v1024 = vadd.f32 %v1016, 1e-05
        %v1025 = vadd.f32 %v1017, 1e-05
        %v1026 = vrsqrt.pop %v1018
        %v1027 = vrsqrt.pop %v1019
        %v1028 = vrsqrt.pop %v1020
        %v1029 = vrsqrt.pop %v1021
        %v1030 = vrsqrt.pop %v1022
        %v1031 = vrsqrt.pop %v1023
        %v1032 = vrsqrt.pop %v1024
        %v1033 = vrsqrt.pop %v1025
        %v1034 = vmul.f32 %v994, %v1026
        %v1035 = vmul.f32 %v995, %v1027
        %v1036 = vmul.f32 %v996, %v1028
        %v1037 = vmul.f32 %v997, %v1029
        %v1038 = vmul.f32 %v998, %v1030
        %v1039 = vmul.f32 %v999, %v1031
        %v1040 = vmul.f32 %v1000, %v1032
        %v1041 = vmul.f32 %v1001, %v1033
        %v1042 = vld [vmem:[%s5] sm:$0xff]
        %v1043 = vld [vmem:[%s5 + $0x8] sm:$0xff]
        %v1044 = vld [vmem:[%s5 + $0x10] sm:$0xff]
        %v1045 = vld [vmem:[%s5 + $0x18] sm:$0xff]
        %v1046 = vld [vmem:[%s6] sm:$0x1]
        %v1048 = vlaneseq
        %v1049 = vshrl.u32 %v1048, 7
        %v1050 = vsub.s32 0, %v1049
        %v1051 = vrot.slane %v1046, %v1050
        %v1054 = vsel %vm920, %v1034, 0
        %v1057 = vsel %vm920, %v1035, 0
        %v1060 = vsel %vm920, %v1036, 0
        %v1063 = vsel %vm920, %v1037, 0
        %v1066 = vsel %vm920, %v1038, 0
        %v1069 = vsel %vm920, %v1039, 0
        %v1072 = vsel %vm920, %v1040, 0
        %v1075 = vsel %vm920, %v1041, 0
        %1077 = vmatprep.subr.mxu0 0.0
        %1078 = vmatpush1.msra.mxu0 0.0
        %1079 = vmatprep.subr.mxu0 0.0
        %1080 = vmatpush1.msra.mxu0 0.0
        %1081 = vmatprep.subr.mxu0 0.0
        %1082 = vmatpush1.msra.mxu0 0.0
        %1083 = vmatprep.subr.mxu0 0.0
        %1084 = vmatpush1.msra.mxu0 0.0
        %1085 = vmatprep.subr.mxu0 0.0
        %1086 = vmatpush1.msra.mxu0 0.0
        %1087 = vmatprep.subr.mxu0 0.0
        %1088 = vmatpush1.msra.mxu0 0.0
        %1089 = vmatprep.subr.mxu0 0.0
        %1090 = vmatpush1.msra.mxu0 0.0
        %1091 = vmatprep.subr.mxu0 0.0
        %1092 = vmatpush1.msra.mxu0 0.0
        %1093 = vmatprep.subr.mxu0 0.0
        %1094 = vmatpush1.msra.mxu0 0.0
        %1095 = vmatprep.subr.mxu0 0.0
        %1096 = vmatpush1.msra.mxu0 0.0
        %1097 = vmatprep.subr.mxu0 0.0
        %1098 = vmatpush1.msra.mxu0 0.0
        %1099 = vmatprep.subr.mxu0 0.0
        %1100 = vmatpush1.msra.mxu0 0.0
        %1101 = vmatprep.subr.mxu0 0.0
        %1102 = vmatpush1.msra.mxu0 %v1045
        %1103 = vmatprep.subr.mxu0 0.0
        %1104 = vmatpush1.msra.mxu0 %v1044
        %1105 = vmatprep.subr.mxu0 0.0
        %1106 = vmatpush1.msra.mxu0 %v1043
        %1107 = vmatprep.subr.mxu0 0.0
        %1108 = vmatpush1.msra.mxu0 %v1042
        %1109 = vmatprep.subr.mxu0 0.0
        %1110 = vmatpush2.msra.mxu0 0.0
        %1111 = vmatprep.subr.mxu0 0.0
        %1112 = vmatpush2.msra.mxu0 0.0
        %1113 = vmatprep.subr.mxu0 0.0
        %1114 = vmatpush2.msra.mxu0 0.0
        %1115 = vmatprep.subr.mxu0 0.0
        %1116 = vmatpush2.msra.mxu0 0.0
        %1117 = vmatprep.subr.mxu0 0.0
        %1118 = vmatpush2.msra.mxu0 0.0
        %1119 = vmatprep.subr.mxu0 0.0
        %1120 = vmatpush2.msra.mxu0 0.0
        %1121 = vmatprep.subr.mxu0 0.0
        %1122 = vmatpush2.msra.mxu0 0.0
        %1123 = vmatprep.subr.mxu0 0.0
        %1124 = vmatpush2.msra.mxu0 0.0
        %1125 = vmatprep.subr.mxu0 0.0
        %1126 = vmatpush2.msra.mxu0 0.0
        %1127 = vmatprep.subr.mxu0 0.0
        %1128 = vmatpush2.msra.mxu0 0.0
        %1129 = vmatprep.subr.mxu0 0.0
        %1130 = vmatpush2.msra.mxu0 0.0
        %1131 = vmatprep.subr.mxu0 0.0
        %1132 = vmatpush2.msra.mxu0 0.0
        %1133 = vmatprep.subr.mxu0 0.0
        %1134 = vmatpush2.msra.mxu0 0.0
        %1135 = vmatprep.subr.mxu0 0.0
        %1136 = vmatpush2.msra.mxu0 0.0
        %1137 = vmatprep.subr.mxu0 0.0
        %1138 = vmatpush2.msra.mxu0 0.0
        %1139 = vmatprep.subr.mxu0 0.0
        %1140 = vmatpush2.msra.mxu0 0.0
        %1141 = vmatprep.mubr.f32.mxu0 0.0
        %1142 = vmatmul.mubr.f32.gmra.mxu0 %v1054
        %v1143 = vpop.f32.mrf.mxu0
        %v1144 = vadd.f32 %v1051, %v1143
        %v1145 = vpop.f32.mrf.mxu0
        %1146 = vmatprep.mubr.f32.mxu0 0.0
        %1147 = vmatmul.mubr.f32.gmra.mxu0 %v1057
        %v1148 = vpop.f32.mrf.mxu0
        %v1149 = vadd.f32 %v1051, %v1148
        %v1150 = vpop.f32.mrf.mxu0
        %1151 = vmatprep.mubr.f32.mxu0 0.0
        %1152 = vmatmul.mubr.f32.gmra.mxu0 %v1060
        %v1153 = vpop.f32.mrf.mxu0
        %v1154 = vadd.f32 %v1051, %v1153
        %v1155 = vpop.f32.mrf.mxu0
        %1156 = vmatprep.mubr.f32.mxu0 0.0
        %1157 = vmatmul.mubr.f32.gmra.mxu0 %v1063
        %v1158 = vpop.f32.mrf.mxu0
        %v1159 = vadd.f32 %v1051, %v1158
        %v1160 = vpop.f32.mrf.mxu0
        %1161 = vmatprep.mubr.f32.mxu0 0.0
        %1162 = vmatmul.mubr.f32.gmra.mxu0 %v1066
        %v1163 = vpop.f32.mrf.mxu0
        %v1164 = vadd.f32 %v1051, %v1163
        %v1165 = vpop.f32.mrf.mxu0
        %1166 = vmatprep.mubr.f32.mxu0 0.0
        %1167 = vmatmul.mubr.f32.gmra.mxu0 %v1069
        %v1168 = vpop.f32.mrf.mxu0
        %v1169 = vadd.f32 %v1051, %v1168
        %v1170 = vpop.f32.mrf.mxu0
        %1171 = vmatprep.mubr.f32.mxu0 0.0
        %1172 = vmatmul.mubr.f32.gmra.mxu0 %v1072
        %v1173 = vpop.f32.mrf.mxu0
        %v1174 = vadd.f32 %v1051, %v1173
        %v1175 = vpop.f32.mrf.mxu0
        %1176 = vmatprep.mubr.f32.mxu0 0.0
        %1177 = vmatmul.mubr.f32.gmra.mxu0 %v1075
        %v1178 = vpop.f32.mrf.mxu0
        %v1179 = vadd.f32 %v1051, %v1178
        %v1180 = vpop.f32.mrf.mxu0
        %1181 = vdwg.mxu0
        %vm1182 = vcmask 130048
        %1183 = vst.msk [vmem:[%s371] sm:$0xff] %vm1182, %v1144
        %1184 = vst.msk [vmem:[%s371 + $0x8] sm:$0xff] %vm1182, %v1149
        %1185 = vst.msk [vmem:[%s371 + $0x10] sm:$0xff] %vm1182, %v1154
        %1186 = vst.msk [vmem:[%s371 + $0x18] sm:$0xff] %vm1182, %v1159
        %1187 = vst.msk [vmem:[%s371 + $0x20] sm:$0xff] %vm1182, %v1164
        %1188 = vst.msk [vmem:[%s371 + $0x28] sm:$0xff] %vm1182, %v1169
        %1189 = vst.msk [vmem:[%s371 + $0x30] sm:$0xff] %vm1182, %v1174
        %1190 = vst.msk [vmem:[%s371 + $0x38] sm:$0xff] %vm1182, %v1179
        %s1191 = sand.u32 %s227, 1
        %s1192 = scalar_lea.sflag [#allocation3], %s1191
        %s1193 = sand.u32 %s227, 1
        %s1194 = smul.addr %s1193, 64
        %s1195 = scalar_lea.vmem [#allocation2], %s1194
        // Predicated region
        $region49: #{tpu_custom_call.1} parent=47 // pred_check
          %p1196 = pneg %p237
        $region50: #{tpu_custom_call.1} parent=47 // pred_check_branch
          %1198 = sbr.rel (%p1196) target = $region52
        $region51: #{tpu_custom_call.1} parent=47 // pred_region
          %s1199 = smul.u32 8, %s27
          %s1201 = ssub.s32 1024, 1024
          %1202 = vsyncadd %s1192, %s1201
          %s1203 = smul.addr %s1199, 2
          %s1204 = sadd.s32 %s28, %s1203
          %s1205 = smul.addr %s26, 32
          %s1206 = sadd.s32 %s1204, %s1205
          %s1207 = smul.addr %s1206, 128
          %s1208 = scalar_lea.hbm %s7, %s1207
          %s1209 = sshll.u32 %s1195, 4
          %s1210 = int_to_ptr.vmem [resolvable:$true] %s1209
          %1215 = dma.vmem_to_hbm [thread:$0]  %s1210, 1024, %s1208, %s1192, 128, 256, 8
        $region52: #{tpu_custom_call.1} parent=47 // pred_fallthru
          _
      $region48: #{tpu_custom_call.1} parent=5 // pred_fallthru
        _
      %p1216 = scmp.le.s32.totalorder 2, %s16
      // Predicated region
      $region53: #{tpu_custom_call.1} parent=5 // pred_check
        %p1217 = pneg %p1216
      $region54: #{tpu_custom_call.1} parent=5 // pred_check_branch
        %1219 = sbr.rel (%p1217) target = $region56
      $region55: #{tpu_custom_call.1} parent=5 // pred_region
        %s1220 = ssub.s32 %s16, 2
        // Predicated region
        $region57: #{tpu_custom_call.1} parent=55 // pred_check
          %p1221 = pneg %p243
        $region58: #{tpu_custom_call.1} parent=55 // pred_check_branch
          %1223 = sbr.rel (%p1221) target = $region60
        $region59: #{tpu_custom_call.1} parent=55 // pred_region
          %s1224 = sand.u32 %s228, 1
          %s1225 = scalar_lea.sflag [#allocation3], %s1224
          %s1226 = sand.u32 %s228, 1
          %s1227 = smul.addr %s1226, 64
          %s1228 = scalar_lea.vmem [#allocation2], %s1227
          %1229 = dma.done %s1225, 1024
        $region60: #{tpu_custom_call.1} parent=55 // pred_fallthru
          _
      $region56: #{tpu_custom_call.1} parent=5 // pred_fallthru
        _
    $region6: #{tpu_custom_call.1} parent=1 // loop_footer
      %s20 = sadd.s32 1, %s16
    $region7: #{tpu_custom_call.1} parent=1 // loop_footer_branch
      %15 = sbr.rel target = $region3
    $region8: #{tpu_custom_call.1} parent=1 // loop_exit
      _
    %1230 = vsyncpa [#allocation3], 1
    %s1231 = scalar_lea.sflag [#allocation3], 1
    %1232 = vsyncpa %s1231, 1

</llo_original>
